<compile_context>
chip_gen: v7x
topology: tpu7x:2x2x1
jax: 0.10.0
libtpu: 0.0.40
codegen_flags: <defaults>
</compile_context>

<pallas_src>
import jax
import jax.numpy as jnp
from jax.experimental import pallas as pl
from jax.experimental.pallas import tpu as pltpu

IN_DIM = 256
HID_DIM = 64
OUT_DIM = 1
_LANES = 128


def _round_up(n, m):
    return ((n + m - 1) // m) * m


def _vmem_capacity_bytes():
    """Best-effort physical VMEM query; None if unavailable."""
    try:
        info = pltpu.get_tpu_info()
        cap = getattr(info, "vmem_capacity_bytes", None)
        return int(cap) if cap is not None else None
    except Exception:
        return None


# -----------------------------------------------------------------------------
# Kernel A (default for B >= 128): lane-dense output.
#   x tile: (TB, 256)   ->   output slab: (1, G, 128),  G = TB // 128.
# Row-major flatten of the slab is exactly batch order.
# -----------------------------------------------------------------------------
def _mlp_kernel_lane_dense(x_ref, w1_ref, b1_ref, w2_ref, b2_ref, o_ref):
    G = o_ref.shape[1]

    # Hoist parameter loads out of the group loop (loop-invariant).
    w1 = w1_ref[...]          # (256, 64)
    b1 = b1_ref[...]          # (1, 64)
    w2 = w2_ref[...]          # (1, 64)
    b2 = b2_ref[0, 0]         # scalar (SMEM)

    # 128x128 identity mask used to move per-row scalars (one per sublane)
    # into lanes via a keepdims sublane reduction:
    #   row[l] = sum_j (col[j] if j == l else 0).
    rid = jax.lax.broadcasted_iota(jnp.int32, (_LANES, _LANES), 0)
    cid = jax.lax.broadcasted_iota(jnp.int32, (_LANES, _LANES), 1)
    eye_mask = rid == cid

    def body(g, carry):
        r0 = pl.multiple_of(g * _LANES, _LANES)
        xg = x_ref[pl.ds(r0, _LANES), :]                       # (128, 256)
        # fc1 on the MXU, f32 accumulate; precision pinned explicitly.
        hg = jnp.dot(xg, w1, preferred_element_type=jnp.float32,
                     precision=jax.lax.Precision.DEFAULT)       # (128, 64)
        hg = jnp.maximum(hg + b1, 0.0)                          # ReLU (VPU)
        # Dropout(p=0.2): identity in inference mode.
        # fc2 (64 -> 1) as VPU broadcast-mul + lane reduction.
        colg = jnp.sum(hg * w2, axis=-1, keepdims=True)         # (128, 1)
        # Sublane -> lane relayout via masked select + sublane reduction.
        # (jnp.where, not multiply: garbage padding rows only affect their own
        #  lane, never the whole group.)
        diag = jnp.where(eye_mask, colg, 0.0)                   # (128, 128)
        rowg = jnp.sum(diag, axis=0, keepdims=True)             # (1, 128)
        o_ref[0, pl.ds(g, 1), :] = rowg + b2
        return carry

    jax.lax.fori_loop(0, G, body, 0)


# -----------------------------------------------------------------------------
# Kernel B (tiny batches / fallback): (TB, 1) column output.
# No cross-row ops, so padding rows of a partial last tile are harmless
# (their outputs fall outside B and are discarded).
# -----------------------------------------------------------------------------
def _mlp_kernel_column(x_ref, w1_ref, b1_ref, w2_ref, b2_ref, o_ref):
    h = jnp.dot(x_ref[...], w1_ref[...], preferred_element_type=jnp.float32,
                precision=jax.lax.Precision.DEFAULT)            # (TB, 64) MXU
    h = jnp.maximum(h + b1_ref[...], 0.0)                       # ReLU
    # Dropout(p=0.2): identity in inference mode.
    s = h * w2_ref[...]                                         # (TB, 64)
    o_ref[...] = jnp.sum(s, axis=-1, keepdims=True) + b2_ref[0, 0]


def fast_sentiment_forward(x, w1, b1, w2, b2, *, block_b=None,
                           vmem_limit_bytes=None, lane_dense_out=True):
    """x: (B, 256) f32/bf16; w1: (256, 64); b1: (1, 64); w2: (64, 1); b2: (1, 1)."""
    B = x.shape[0]
    assert x.shape[1] == IN_DIM

    # w1 follows the activation dtype (MXU-native bf16 path if x is bf16);
    # biases / fc2 stay f32 since all post-MXU math is f32.
    w1 = w1.astype(x.dtype)
    b1_row = jnp.asarray(b1, jnp.float32).reshape(1, HID_DIM)
    w2_row = jnp.asarray(w2, jnp.float32).reshape(1, HID_DIM)
    b2_s = jnp.asarray(b2, jnp.float32).reshape(1, 1)

    cap = _vmem_capacity_bytes()
    big_vmem = cap is not None and cap >= 100 * (1 << 20)   # v5e/v6e: 128 MiB
    if block_b is None:
        block_b = 16384 if big_vmem else 8192               # v7x: 64 MiB VMEM

    itemsize = x.dtype.itemsize
    flops = 2 * B * IN_DIM * HID_DIM + 4 * B * HID_DIM
    bytes_accessed = (B * IN_DIM * itemsize
                      + IN_DIM * HID_DIM * itemsize
                      + (2 * HID_DIM + 1) * 4
                      + B * OUT_DIM * 4)

    # Resident parameters: constant index_maps -> no per-tile re-DMA.
    param_specs = [
        pl.BlockSpec((IN_DIM, HID_DIM), lambda i: (0, 0)),   # w1
        pl.BlockSpec((1, HID_DIM), lambda i: (0, 0)),        # b1
        pl.BlockSpec((1, HID_DIM), lambda i: (0, 0)),        # w2 row
        pl.BlockSpec(memory_space=pltpu.MemorySpace.SMEM),   # b2 scalar
    ]
    vmem_ceiling = (96 if big_vmem else 48) << 20

    use_lane_dense = bool(lane_dense_out) and B >= _LANES

    if use_lane_dense:
        tb = max(_LANES, (int(block_b) // _LANES) * _LANES)
        tb = min(tb, (B // _LANES) * _LANES)      # tile never exceeds the array
        g_per_tile = tb // _LANES
        num_tiles = pl.cdiv(B, tb)
        if vmem_limit_bytes is None:
            need = (2 * tb * IN_DIM * itemsize          # x double buffer
                    + 2 * g_per_tile * _LANES * 4       # lane-dense out x2
                    + (2 << 20))                        # params / per-group temps
            vmem_limit_bytes = min(max(need + (8 << 20), 32 << 20), vmem_ceiling)

        out = pl.pallas_call(
            _mlp_kernel_lane_dense,
            out_shape=jax.ShapeDtypeStruct((num_tiles, g_per_tile, _LANES),
                                           jnp.float32),
            grid_spec=pltpu.PrefetchScalarGridSpec(
                num_scalar_prefetch=0,
                grid=(num_tiles,),
                in_specs=[pl.BlockSpec((tb, IN_DIM), lambda i: (i, 0))]
                         + param_specs,
                out_specs=pl.BlockSpec((1, g_per_tile, _LANES),
                                       lambda i: (i, 0, 0)),
            ),
            compiler_params=pltpu.CompilerParams(
                dimension_semantics=("parallel",),
                vmem_limit_bytes=int(vmem_limit_bytes),
            ),
            cost_estimate=pl.CostEstimate(
                flops=flops, transcendentals=0, bytes_accessed=bytes_accessed),
        )(x, w1, b1_row, w2_row, b2_s)
        # Row-major flatten of (tiles, G, 128) is batch order; garbage rows of
        # a partial last tile land past B and are sliced off here.
        return out.reshape(-1)[:B].reshape(B, OUT_DIM)

    # ---- tiny-batch / fallback path: (TB, 1) column output --------------------
    blk8 = _round_up(int(block_b), 8)
    tb = B if B <= blk8 else blk8
    num_tiles = pl.cdiv(B, tb)
    if vmem_limit_bytes is None:
        need = (2 * tb * IN_DIM * itemsize      # x double buffer
                + 2 * tb * _LANES * 4           # (TB,1) out, lane-padded, x2
                + 2 * tb * _LANES * 4           # h / s intermediates (padded)
                + (2 << 20))
        vmem_limit_bytes = min(max(need + (8 << 20), 32 << 20), vmem_ceiling)

    return pl.pallas_call(
        _mlp_kernel_column,
        out_shape=jax.ShapeDtypeStruct((B, OUT_DIM), jnp.float32),
        grid_spec=pltpu.PrefetchScalarGridSpec(
            num_scalar_prefetch=0,
            grid=(num_tiles,),
            in_specs=[pl.BlockSpec((tb, IN_DIM), lambda i: (i, 0))] + param_specs,
            out_specs=pl.BlockSpec((tb, OUT_DIM), lambda i: (i, 0)),
        ),
        compiler_params=pltpu.CompilerParams(
            dimension_semantics=("parallel",),
            vmem_limit_bytes=int(vmem_limit_bytes),
        ),
        cost_estimate=pl.CostEstimate(
            flops=flops, transcendentals=0, bytes_accessed=bytes_accessed),
    )(x, w1, b1_row, w2_row, b2_s)


def init_params(key):
    """Deterministic init mirroring nn.Linear defaults (uniform +/- 1/sqrt(fan_in))."""
    k1, k2, k3, k4 = jax.random.split(key, 4)
    bound1 = 1.0 / jnp.sqrt(IN_DIM)
    bound2 = 1.0 / jnp.sqrt(HID_DIM)
    # Stored pre-transposed: (in, out) so the kernel computes x @ W.
    w1 = jax.random.uniform(k1, (IN_DIM, HID_DIM), jnp.float32, -bound1, bound1)
    b1 = jax.random.uniform(k2, (1, HID_DIM), jnp.float32, -bound1, bound1)
    w2 = jax.random.uniform(k3, (HID_DIM, OUT_DIM), jnp.float32, -bound2, bound2)
    b2 = jax.random.uniform(k4, (1, OUT_DIM), jnp.float32, -bound2, bound2)
    return w1, b1, w2, b2


def reference_forward(x, w1, b1, w2, b2):
    h = jnp.maximum(x @ w1 + b1, 0.0)
    return h @ w2 + b2


if __name__ == "__main__":
    key = jax.random.PRNGKey(0)
    kx, kp = jax.random.split(key)
    w1, b1, w2, b2 = init_params(kp)

    # 1) Small batch consistent with the module: (8, 256) -> (8, 1)
    #    (column-output path).
    B = 8
    x = jax.random.normal(kx, (B, IN_DIM), jnp.float32)
    out = jax.block_until_ready(fast_sentiment_forward(x, w1, b1, w2, b2))
    ref = reference_forward(x, w1, b1, w2, b2)
    assert out.shape == (B, OUT_DIM)
    assert jnp.allclose(out, ref, atol=1e-3, rtol=1e-3), "mismatch (B=8, column path)"

    # 2) Lane-dense path with a batch grid and a partial last tile:
    #    B=200, TB=128 -> 2 grid steps, second x tile partially out of bounds.
    B2 = 200
    x2 = jax.random.normal(kx, (B2, IN_DIM), jnp.float32)
    out2 = jax.block_until_ready(
        fast_sentiment_forward(x2, w1, b1, w2, b2, block_b=128))
    ref2 = reference_forward(x2, w1, b1, w2, b2)
    assert out2.shape == (B2, OUT_DIM)
    assert jnp.allclose(out2, ref2, atol=1e-3, rtol=1e-3), "mismatch (B=200, lane-dense)"

    # 3) Column fallback path with a multi-step grid (B=200, TB=64).
    out3 = jax.block_until_ready(
        fast_sentiment_forward(x2, w1, b1, w2, b2, block_b=64,
                               lane_dense_out=False))
    assert out3.shape == (B2, OUT_DIM)
    assert jnp.allclose(out3, ref2, atol=1e-3, rtol=1e-3), "mismatch (B=200, column)"

    print("KERNEL_OK")
</pallas_src>

<mosaic_0001>
module attributes {stable_mosaic.version = 11 : i64} {
  func.func @_mlp_kernel_column(%arg0: i32, %arg1: memref<8x256xf32, #tpu.memory_space<vmem>>, %arg2: memref<256x64xf32, #tpu.memory_space<vmem>>, %arg3: memref<1x64xf32, #tpu.memory_space<vmem>>, %arg4: memref<1x64xf32, #tpu.memory_space<vmem>>, %arg5: memref<1x1xf32, #tpu.memory_space<smem>>, %arg6: memref<8x1xf32, #tpu.memory_space<vmem>>) attributes {dimension_semantics = [#tpu.dimension_semantics<parallel>], iteration_bounds = array<i64: 1>, scalar_prefetch = 0 : i64, scratch_operands = 0 : i64, tpu.core_type = #tpu.core_type<tc>, window_params = [{transform_indices = @transform_0, window_bounds = array<i64: 8, 256>}, {pipeline_mode = #tpu.pipeline_mode<synchronous>, transform_indices = @transform_1, window_bounds = array<i64: 256, 64>}, {pipeline_mode = #tpu.pipeline_mode<synchronous>, transform_indices = @transform_2, window_bounds = array<i64: 1, 64>}, {pipeline_mode = #tpu.pipeline_mode<synchronous>, transform_indices = @transform_3, window_bounds = array<i64: 1, 64>}, {transform_indices = @transform_4, window_bounds = array<i64: 1, 1>}, {transform_indices = @transform_5, window_bounds = array<i64: 8, 1>}]} {
    %c0 = arith.constant 0 : index
    %c0_0 = arith.constant 0 : index
    %0 = vector.load %arg1[%c0, %c0_0] : memref<8x256xf32, #tpu.memory_space<vmem>>, vector<8x256xf32>
    %c0_1 = arith.constant 0 : index
    %c0_2 = arith.constant 0 : index
    %1 = vector.load %arg2[%c0_1, %c0_2] : memref<256x64xf32, #tpu.memory_space<vmem>>, vector<256x64xf32>
    %cst = arith.constant dense<0.000000e+00> : vector<8x64xf32>
    %2 = tpu.matmul %0, %1, %cst {dimension_numbers = #tpu.dot_dimension_numbers<[1], [0], [0], [1], [0, 0, 1, 1], [], []>} : vector<8x256xf32>, vector<256x64xf32>, vector<8x64xf32> -> vector<8x64xf32>
    %c0_3 = arith.constant 0 : index
    %c0_4 = arith.constant 0 : index
    %3 = vector.load %arg3[%c0_3, %c0_4] : memref<1x64xf32, #tpu.memory_space<vmem>>, vector<1x64xf32>
    %4 = vector.broadcast %3 : vector<1x64xf32> to vector<8x64xf32>
    %5 = arith.addf %2, %4 : vector<8x64xf32>
    %cst_5 = arith.constant 0.000000e+00 : f32
    %6 = vector.broadcast %cst_5 : f32 to vector<8x64xf32>
    %7 = arith.maximumf %5, %6 : vector<8x64xf32>
    %c0_6 = arith.constant 0 : index
    %c0_7 = arith.constant 0 : index
    %8 = vector.load %arg4[%c0_6, %c0_7] : memref<1x64xf32, #tpu.memory_space<vmem>>, vector<1x64xf32>
    %9 = vector.broadcast %8 : vector<1x64xf32> to vector<8x64xf32>
    %10 = arith.mulf %7, %9 : vector<8x64xf32>
    %cst_8 = arith.constant dense<0.000000e+00> : vector<8xf32>
    %11 = vector.multi_reduction <add>, %10, %cst_8 [1] : vector<8x64xf32> to vector<8xf32>
    %12 = vector.shape_cast %11 : vector<8xf32> to vector<8x1xf32>
    %c0_9 = arith.constant 0 : index
    %c0_10 = arith.constant 0 : index
    %13 = memref.load %arg5[%c0_9, %c0_10] : memref<1x1xf32, #tpu.memory_space<smem>>
    %14 = vector.broadcast %13 : f32 to vector<8x1xf32>
    %15 = arith.addf %12, %14 : vector<8x1xf32>
    %c0_11 = arith.constant 0 : index
    %c0_12 = arith.constant 0 : index
    %16 = vector.load %arg6[%c0_11, %c0_12] : memref<8x1xf32, #tpu.memory_space<vmem>>, vector<8x1xf32>
    tpu.vector_store %arg6[%c0_11, %c0_12], %15 {strides = array<i32>} : memref<8x1xf32, #tpu.memory_space<vmem>>, vector<8x1xf32>,
    return
  }
  func.func @transform_0(%arg0: i32) -> (i32, i32) {
    %c0_i32 = arith.constant 0 : i32
    %c0_i32_0 = arith.constant 0 : i32
    return %arg0, %c0_i32 : i32, i32
  }
  func.func @transform_1(%arg0: i32) -> (i32, i32) {
    %c0_i32 = arith.constant 0 : i32
    %c0_i32_0 = arith.constant 0 : i32
    %c0_i32_1 = arith.constant 0 : i32
    return %c0_i32, %c0_i32_0 : i32, i32
  }
  func.func @transform_2(%arg0: i32) -> (i32, i32) {
    %c0_i32 = arith.constant 0 : i32
    %c0_i32_0 = arith.constant 0 : i32
    %c0_i32_1 = arith.constant 0 : i32
    return %c0_i32, %c0_i32_0 : i32, i32
  }
  func.func @transform_3(%arg0: i32) -> (i32, i32) {
    %c0_i32 = arith.constant 0 : i32
    %c0_i32_0 = arith.constant 0 : i32
    %c0_i32_1 = arith.constant 0 : i32
    return %c0_i32, %c0_i32_0 : i32, i32
  }
  func.func @transform_4(%arg0: i32) -> (i32, i32) {
    %c0_i32 = arith.constant 0 : i32
    %c0_i32_0 = arith.constant 0 : i32
    %c0_i32_1 = arith.constant 0 : i32
    return %c0_i32, %c0_i32_0 : i32, i32
  }
  func.func @transform_5(%arg0: i32) -> (i32, i32) {
    %c0_i32 = arith.constant 0 : i32
    %c0_i32_0 = arith.constant 0 : i32
    return %arg0, %c0_i32 : i32, i32
  }
}

</mosaic_0001>

<llo_original>
// kernel: tpu_custom_call.1
$region0: #{tpu_custom_call.1}
  #allocation0 [shape = 'u32[]', space=smem, size = 0x4, offset = 0x4, fixed_abs, tag = 'smem constant byte address 0x4 - core index']
  #allocation1 [shape = 'u32[144,128]{1,0:T(1,128)}', space=vmem, size = 0x12000, scoped, tag = 'internal scratch']
  #allocation2 [shape = 'f32[1,1]{1,0:T(1,128)S(6)}', space=smem, size = 0x200, scoped, tag = 'scoped memory for tpu_custom_call.1']
  %s0 = inlined_call_operand.vmem [shape: f32[8,256], index: 0, kind: input, shape index: {}]
  %s1 = inlined_call_operand.vmem [shape: f32[256,64], index: 1, kind: input, shape index: {}]
  %s2 = inlined_call_operand.vmem [shape: f32[1,64], index: 2, kind: input, shape index: {}]
  %s3 = inlined_call_operand.vmem [shape: f32[1,64], index: 3, kind: input, shape index: {}]
  %s4 = inlined_call_operand.<no memory space> [shape: f32[1,1], index: 4, kind: input, shape index: {}]
  %s5 = inlined_call_operand.vmem [shape: f32[8,1], index: 5, kind: output, shape index: {}]
  %s6 = sld [smem:[#allocation0]]
  $region30: #{tpu_custom_call.1} parent=0
    _
  %s8 = ssub.s32 1, %s6
  %s9 = scalar_select 0, %s8, %s6
  %10 = sst [smem:[#allocation2]] %s4
  // Predicated region
  $region2: #{tpu_custom_call.1} parent=0 // pred_check
    _
  $region3: #{tpu_custom_call.1} parent=0 // pred_check_branch
    %12 = sbr.rel (0) target = $region5
  $region4: #{tpu_custom_call.1} parent=0 // pred_region
    _
  $region5: #{tpu_custom_call.1} parent=0 // pred_fallthru
    _
  // Predicated region
  $region6: #{tpu_custom_call.1} parent=0 // pred_check
    _
  $region7: #{tpu_custom_call.1} parent=0 // pred_check_branch
    %14 = sbr.rel (0) target = $region9
  $region8: #{tpu_custom_call.1} parent=0 // pred_region
    _
  $region9: #{tpu_custom_call.1} parent=0 // pred_fallthru
    _
  // Predicated region
  $region10: #{tpu_custom_call.1} parent=0 // pred_check
    _
  $region11: #{tpu_custom_call.1} parent=0 // pred_check_branch
    %16 = sbr.rel (0) target = $region13
  $region12: #{tpu_custom_call.1} parent=0 // pred_region
    _
  $region13: #{tpu_custom_call.1} parent=0 // pred_fallthru
    _
  // Predicated region
  $region14: #{tpu_custom_call.1} parent=0 // pred_check
    _
  $region15: #{tpu_custom_call.1} parent=0 // pred_check_branch
    %18 = sbr.rel (0) target = $region17
  $region16: #{tpu_custom_call.1} parent=0 // pred_region
    _
  $region17: #{tpu_custom_call.1} parent=0 // pred_fallthru
    _
  // Predicated region
  $region18: #{tpu_custom_call.1} parent=0 // pred_check
    _
  $region19: #{tpu_custom_call.1} parent=0 // pred_check_branch
    %20 = sbr.rel (0) target = $region21
  $region20: #{tpu_custom_call.1} parent=0 // pred_region
    _
  $region21: #{tpu_custom_call.1} parent=0 // pred_fallthru
    _
  %v21 = vld [vmem:[%s0] sm:$0xff]
  %v22 = vld [vmem:[%s0 + $0x8] sm:$0xff]
  %v23 = vld [vmem:[%s1] sm:$0xff]
  %v24 = vld [vmem:[%s1 + $0x8] sm:$0xff]
  %v25 = vld [vmem:[%s1 + $0x10] sm:$0xff]
  %v26 = vld [vmem:[%s1 + $0x18] sm:$0xff]
  %v27 = vld [vmem:[%s1 + $0x20] sm:$0xff]
  %v28 = vld [vmem:[%s1 + $0x28] sm:$0xff]
  %v29 = vld [vmem:[%s1 + $0x30] sm:$0xff]
  %v30 = vld [vmem:[%s1 + $0x38] sm:$0xff]
  %v31 = vld [vmem:[%s1 + $0x40] sm:$0xff]
  %v32 = vld [vmem:[%s1 + $0x48] sm:$0xff]
  %v33 = vld [vmem:[%s1 + $0x50] sm:$0xff]
  %v34 = vld [vmem:[%s1 + $0x58] sm:$0xff]
  %v35 = vld [vmem:[%s1 + $0x60] sm:$0xff]
  %v36 = vld [vmem:[%s1 + $0x68] sm:$0xff]
  %v37 = vld [vmem:[%s1 + $0x70] sm:$0xff]
  %v38 = vld [vmem:[%s1 + $0x78] sm:$0xff]
  %v39 = vld [vmem:[%s1 + $0x80] sm:$0xff]
  %v40 = vld [vmem:[%s1 + $0x88] sm:$0xff]
  %v41 = vld [vmem:[%s1 + $0x90] sm:$0xff]
  %v42 = vld [vmem:[%s1 + $0x98] sm:$0xff]
  %v43 = vld [vmem:[%s1 + $0xa0] sm:$0xff]
  %v44 = vld [vmem:[%s1 + $0xa8] sm:$0xff]
  %v45 = vld [vmem:[%s1 + $0xb0] sm:$0xff]
  %v46 = vld [vmem:[%s1 + $0xb8] sm:$0xff]
  %v47 = vld [vmem:[%s1 + $0xc0] sm:$0xff]
  %v48 = vld [vmem:[%s1 + $0xc8] sm:$0xff]
  %v49 = vld [vmem:[%s1 + $0xd0] sm:$0xff]
  %v50 = vld [vmem:[%s1 + $0xd8] sm:$0xff]
  %v51 = vld [vmem:[%s1 + $0xe0] sm:$0xff]
  %v52 = vld [vmem:[%s1 + $0xe8] sm:$0xff]
  %v53 = vld [vmem:[%s1 + $0xf0] sm:$0xff]
  %v54 = vld [vmem:[%s1 + $0xf8] sm:$0xff]
  %v55 = vld [vmem:[%s2] sm:$0x1]
  %v57 = vlaneseq
  %v58 = vshrl.u32 %v57, 7
  %v59 = vsub.s32 0, %v58
  %v60 = vrot.slane %v55, %v59
  %62 = vmatprep.subr.mxu0 0.0
  %63 = vmatpush1.msra.mxu0 %v23
  %64 = vmatprep.subr.mxu0 0.0
  %65 = vmatpush1.msra.mxu0 %v24
  %66 = vmatprep.subr.mxu0 0.0
  %67 = vmatpush1.msra.mxu0 %v25
  %68 = vmatprep.subr.mxu0 0.0
  %69 = vmatpush1.msra.mxu0 %v26
  %70 = vmatprep.subr.mxu0 0.0
  %71 = vmatpush1.msra.mxu0 %v27
  %72 = vmatprep.subr.mxu0 0.0
  %73 = vmatpush1.msra.mxu0 %v28
  %74 = vmatprep.subr.mxu0 0.0
  %75 = vmatpush1.msra.mxu0 %v29
  %76 = vmatprep.subr.mxu0 0.0
  %77 = vmatpush1.msra.mxu0 %v30
  %78 = vmatprep.subr.mxu0 0.0
  %79 = vmatpush1.msra.mxu0 %v31
  %80 = vmatprep.subr.mxu0 0.0
  %81 = vmatpush1.msra.mxu0 %v32
  %82 = vmatprep.subr.mxu0 0.0
  %83 = vmatpush1.msra.mxu0 %v33
  %84 = vmatprep.subr.mxu0 0.0
  %85 = vmatpush1.msra.mxu0 %v34
  %86 = vmatprep.subr.mxu0 0.0
  %87 = vmatpush1.msra.mxu0 %v35
  %88 = vmatprep.subr.mxu0 0.0
  %89 = vmatpush1.msra.mxu0 %v36
  %90 = vmatprep.subr.mxu0 0.0
  %91 = vmatpush1.msra.mxu0 %v37
  %92 = vmatprep.subr.mxu0 0.0
  %93 = vmatpush1.msra.mxu0 %v38
  %94 = vmatprep.subr.mxu0 0.0
  %95 = vmatpush1.msra.mxu0 %v39
  %96 = vmatprep.subr.mxu0 0.0
  %97 = vmatpush1.msra.mxu0 %v40
  %98 = vmatprep.subr.mxu0 0.0
  %99 = vmatpush1.msra.mxu0 %v41
  %100 = vmatprep.subr.mxu0 0.0
  %101 = vmatpush1.msra.mxu0 %v42
  %102 = vmatprep.subr.mxu0 0.0
  %103 = vmatpush1.msra.mxu0 %v43
  %104 = vmatprep.subr.mxu0 0.0
  %105 = vmatpush1.msra.mxu0 %v44
  %106 = vmatprep.subr.mxu0 0.0
  %107 = vmatpush1.msra.mxu0 %v45
  %108 = vmatprep.subr.mxu0 0.0
  %109 = vmatpush1.msra.mxu0 %v46
  %110 = vmatprep.subr.mxu0 0.0
  %111 = vmatpush1.msra.mxu0 %v47
  %112 = vmatprep.subr.mxu0 0.0
  %113 = vmatpush1.msra.mxu0 %v48
  %114 = vmatprep.subr.mxu0 0.0
  %115 = vmatpush1.msra.mxu0 %v49
  %116 = vmatprep.subr.mxu0 0.0
  %117 = vmatpush1.msra.mxu0 %v50
  %118 = vmatprep.subr.mxu0 0.0
  %119 = vmatpush1.msra.mxu0 %v51
  %120 = vmatprep.subr.mxu0 0.0
  %121 = vmatpush1.msra.mxu0 %v52
  %122 = vmatprep.subr.mxu0 0.0
  %123 = vmatpush1.msra.mxu0 %v53
  %124 = vmatprep.subr.mxu0 0.0
  %125 = vmatpush1.msra.mxu0 %v54
  %126 = vmatprep.mubr.f32.mxu0 %v22
  %127 = vmatmul.mubr.f32.gmra.mrb[0].mxu0 %v21
  %v128 = vpop.f32.mrb[0].mxu0
  %v129 = vadd.f32 %v60, %v128
  %v130 = vpop.f32.mrb[0].mxu0
  %131 = vdwg.mxu0
  %v132 = vmax.f32 %v129, 0.0
  %v133 = vld [vmem:[%s3] sm:$0x1]
  %v135 = vlaneseq
  %v136 = vshrl.u32 %v135, 7
  %v137 = vsub.s32 0, %v136
  %v138 = vrot.slane %v133, %v137
  %v140 = vmul.f32 %v132, %v138
  %vm141 = vcmask 523264
  %v142 = vsel %vm141, %v140, 0.0
  %143 = vadd.xlane.f32.xlu0 %v142
  %v144 = vpop.xlane.xlu0 %143
  %s145 = sld [smem:[#allocation2]]
  %v146 = vstv %s145
  %v147 = vadd.f32 %v144, %v146
  %vm148 = vcmask 7168
  %149 = vst.msk [vmem:[%s5] sm:$0xff] %vm148, %v147
  // Predicated region
  $region22: #{tpu_custom_call.1} parent=0 // pred_check
    _
  $region23: #{tpu_custom_call.1} parent=0 // pred_check_branch
    %151 = sbr.rel (0) target = $region25
  $region24: #{tpu_custom_call.1} parent=0 // pred_region
    _
  $region25: #{tpu_custom_call.1} parent=0 // pred_fallthru
    _
  // Predicated region
  $region26: #{tpu_custom_call.1} parent=0 // pred_check
    _
  $region27: #{tpu_custom_call.1} parent=0 // pred_check_branch
    %153 = sbr.rel (0) target = $region29
  $region28: #{tpu_custom_call.1} parent=0 // pred_region
    _
  $region29: #{tpu_custom_call.1} parent=0 // pred_fallthru
    _

</llo_original>
